<compile_context>
chip_gen: v6e
topology: v6e:2x2x1
jax: 0.10.0
libtpu: 0.0.40
codegen_flags: <defaults>
</compile_context>

<pallas_src>
import functools

import jax
import jax.numpy as jnp
from jax.experimental import pallas as pl
from jax.experimental.pallas import tpu as pltpu


def _exp_normal_rbf_kernel(dist_ref, means_ref, betas_ref, out_ref,
                           *, alpha, cutoff_lower):
    # dist_ref : (TN, 1)      tile of distances
    # means_ref: (1, R_pad)   full (padded) means row, resident across grid
    # betas_ref: (1, R_pad)   full (padded) betas row, resident across grid
    # out_ref  : (TN, R_pad)  lane-dense output tile
    d = dist_ref[...]                                    # (TN, 1)
    e = jnp.exp(alpha * (cutoff_lower - d))              # (TN, 1), EUP
    t = e - means_ref[...]                               # (TN, R_pad), lane bcast
    out_ref[...] = jnp.exp(-betas_ref[...] * t * t)      # (TN, R_pad)


def exp_normal_rbf(dist, means, betas, *, cutoff_lower, cutoff_upper,
                   tile_n=1024):
    """dist: (N,) float -> (N, num_rbf) float32, matching ExpNormalRBF.forward."""
    n = dist.shape[0]
    num_rbf = means.shape[0]
    alpha = 5.0 / (cutoff_upper - cutoff_lower)

    # Lane-dense output: pad the RBF axis to a multiple of 128.
    r_pad = int(pl.cdiv(num_rbf, 128) * 128)

    # Row tiling: large tiles for throughput, but never bigger than the
    # (sublane-rounded) problem so tiny inputs don't over-pad.
    tile_n = int(min(tile_n, max(8, pl.cdiv(n, 8) * 8)))
    n_pad = int(pl.cdiv(n, tile_n) * tile_n)

    dist2d = jnp.zeros((n_pad, 1), jnp.float32).at[:n, 0].set(
        dist.astype(jnp.float32))
    means2d = jnp.zeros((1, r_pad), jnp.float32).at[0, :num_rbf].set(
        means.astype(jnp.float32))
    betas2d = jnp.zeros((1, r_pad), jnp.float32).at[0, :num_rbf].set(
        betas.astype(jnp.float32))

    kernel = functools.partial(
        _exp_normal_rbf_kernel, alpha=alpha, cutoff_lower=cutoff_lower)

    out = pl.pallas_call(
        kernel,
        out_shape=jax.ShapeDtypeStruct((n_pad, r_pad), jnp.float32),
        grid_spec=pltpu.PrefetchScalarGridSpec(
            num_scalar_prefetch=0,
            grid=(n_pad // tile_n,),
            in_specs=[
                pl.BlockSpec((tile_n, 1), lambda i: (i, 0)),    # dist tile
                pl.BlockSpec((1, r_pad), lambda i: (0, 0)),     # means (resident)
                pl.BlockSpec((1, r_pad), lambda i: (0, 0)),     # betas (resident)
            ],
            out_specs=pl.BlockSpec((tile_n, r_pad), lambda i: (i, 0)),
        ),
        compiler_params=pltpu.CompilerParams(
            dimension_semantics=("parallel",)),
    )(dist2d, means2d, betas2d)

    # Strip row / lane padding.
    return out[:n, :num_rbf]


def make_params(cutoff_lower, cutoff_upper, num_rbf):
    """Deterministic parameter init, identical to ExpNormalRBF._initial_params."""
    start_value = jnp.exp(jnp.float32(-cutoff_upper + cutoff_lower))
    means = jnp.linspace(start_value, 1.0, num_rbf, dtype=jnp.float32)
    betas = jnp.full((num_rbf,),
                     (2.0 / num_rbf * (1.0 - start_value)) ** (-2),
                     dtype=jnp.float32)
    return means, betas


def _reference(dist, means, betas, cutoff_lower, cutoff_upper):
    alpha = 5.0 / (cutoff_upper - cutoff_lower)
    d = dist[:, None].astype(jnp.float32)
    return jnp.exp(-betas[None, :]
                   * (jnp.exp(alpha * (cutoff_lower - d)) - means[None, :]) ** 2)


if __name__ == "__main__":
    cutoff_lower = 0.0
    cutoff_upper = 5.0
    num_rbf = 50

    key = jax.random.PRNGKey(0)
    means, betas = make_params(cutoff_lower, cutoff_upper, num_rbf)

    ok = True
    # Small shapes; second case exercises the internal row-padding path.
    for num_nodes in (64, 37):
        key, sub = jax.random.split(key)
        dist = jax.random.uniform(sub, (num_nodes,), dtype=jnp.float32,
                                  minval=0.0, maxval=cutoff_upper)

        out = exp_normal_rbf(dist, means, betas,
                             cutoff_lower=cutoff_lower,
                             cutoff_upper=cutoff_upper)
        out = jax.block_until_ready(out)

        ref = _reference(dist, means, betas, cutoff_lower, cutoff_upper)
        ok &= out.shape == (num_nodes, num_rbf)
        ok &= bool(jnp.allclose(out, ref, atol=1e-5, rtol=1e-5))

    assert ok
    print("KERNEL_OK")
</pallas_src>

<mosaic_0001>
module attributes {stable_mosaic.version = 11 : i64} {
  func.func @_exp_normal_rbf_kernel(%arg0: i32, %arg1: memref<64x1xf32, #tpu.memory_space<vmem>>, %arg2: memref<1x128xf32, #tpu.memory_space<vmem>>, %arg3: memref<1x128xf32, #tpu.memory_space<vmem>>, %arg4: memref<64x128xf32, #tpu.memory_space<vmem>>) attributes {dimension_semantics = [#tpu.dimension_semantics<parallel>], iteration_bounds = array<i64: 1>, scalar_prefetch = 0 : i64, scratch_operands = 0 : i64, tpu.core_type = #tpu.core_type<tc>, window_params = [{transform_indices = @transform_0, window_bounds = array<i64: 64, 1>}, {pipeline_mode = #tpu.pipeline_mode<synchronous>, transform_indices = @transform_1, window_bounds = array<i64: 1, 128>}, {pipeline_mode = #tpu.pipeline_mode<synchronous>, transform_indices = @transform_2, window_bounds = array<i64: 1, 128>}, {transform_indices = @transform_3, window_bounds = array<i64: 64, 128>}]} {
    %c0 = arith.constant 0 : index
    %c0_0 = arith.constant 0 : index
    %0 = vector.load %arg1[%c0, %c0_0] : memref<64x1xf32, #tpu.memory_space<vmem>>, vector<64x1xf32>
    %cst = arith.constant 0.000000e+00 : f32
    %1 = vector.broadcast %cst : f32 to vector<64x1xf32>
    %2 = arith.subf %1, %0 : vector<64x1xf32>
    %cst_1 = arith.constant 1.000000e+00 : f32
    %3 = vector.broadcast %cst_1 : f32 to vector<64x1xf32>
    %4 = arith.mulf %3, %2 : vector<64x1xf32>
    %5 = math.exp %4 : vector<64x1xf32>
    %c0_2 = arith.constant 0 : index
    %c0_3 = arith.constant 0 : index
    %6 = vector.load %arg2[%c0_2, %c0_3] : memref<1x128xf32, #tpu.memory_space<vmem>>, vector<1x128xf32>
    %7 = vector.broadcast %5 : vector<64x1xf32> to vector<64x128xf32>
    %8 = vector.broadcast %6 : vector<1x128xf32> to vector<64x128xf32>
    %9 = arith.subf %7, %8 : vector<64x128xf32>
    %c0_4 = arith.constant 0 : index
    %c0_5 = arith.constant 0 : index
    %10 = vector.load %arg3[%c0_4, %c0_5] : memref<1x128xf32, #tpu.memory_space<vmem>>, vector<1x128xf32>
    %cst_6 = arith.constant 0.000000e+00 : f32
    %11 = vector.broadcast %cst_6 : f32 to vector<1x128xf32>
    %12 = arith.subf %11, %10 : vector<1x128xf32>
    %13 = vector.broadcast %12 : vector<1x128xf32> to vector<64x128xf32>
    %14 = arith.mulf %13, %9 : vector<64x128xf32>
    %15 = arith.mulf %14, %9 : vector<64x128xf32>
    %16 = math.exp %15 : vector<64x128xf32>
    %c0_7 = arith.constant 0 : index
    %c0_8 = arith.constant 0 : index
    %17 = vector.load %arg4[%c0_7, %c0_8] : memref<64x128xf32, #tpu.memory_space<vmem>>, vector<64x128xf32>
    tpu.vector_store %arg4[%c0_7, %c0_8], %16 {strides = array<i32>} : memref<64x128xf32, #tpu.memory_space<vmem>>, vector<64x128xf32>,
    return
  }
  func.func @transform_0(%arg0: i32) -> (i32, i32) {
    %c0_i32 = arith.constant 0 : i32
    %c0_i32_0 = arith.constant 0 : i32
    return %arg0, %c0_i32 : i32, i32
  }
  func.func @transform_1(%arg0: i32) -> (i32, i32) {
    %c0_i32 = arith.constant 0 : i32
    %c0_i32_0 = arith.constant 0 : i32
    %c0_i32_1 = arith.constant 0 : i32
    return %c0_i32, %c0_i32_0 : i32, i32
  }
  func.func @transform_2(%arg0: i32) -> (i32, i32) {
    %c0_i32 = arith.constant 0 : i32
    %c0_i32_0 = arith.constant 0 : i32
    %c0_i32_1 = arith.constant 0 : i32
    return %c0_i32, %c0_i32_0 : i32, i32
  }
  func.func @transform_3(%arg0: i32) -> (i32, i32) {
    %c0_i32 = arith.constant 0 : i32
    %c0_i32_0 = arith.constant 0 : i32
    return %arg0, %c0_i32 : i32, i32
  }
}

</mosaic_0001>

<llo_original>
// kernel: tpu_custom_call.1
$region0: #{tpu_custom_call.1}
  #allocation0 [shape = 'u32[]', space=smem, size = 0x4, offset = 0x4, fixed_abs, tag = 'smem constant byte address 0x4 - core index']
  #allocation1 [shape = 'u32[144,128]{1,0:T(1,128)}', space=vmem, size = 0x12000, scoped, tag = 'internal scratch']
  %s0 = inlined_call_operand.vmem [shape: f32[64,1], index: 0, kind: input, shape index: {}]
  %s1 = inlined_call_operand.vmem [shape: f32[1,128], index: 1, kind: input, shape index: {}]
  %s2 = inlined_call_operand.vmem [shape: f32[1,128], index: 2, kind: input, shape index: {}]
  %s3 = inlined_call_operand.hbm [shape: f32[64,128], index: 3, kind: output, shape index: {}]
  %s4 = sld [smem:[#allocation0]]
  $region22: #{tpu_custom_call.1} parent=0
    _
  %s6 = ssub.s32 1, %s4
  %s7 = scalar_select 0, %s6, %s4
  $region1: #{tpu_custom_call.1} parent=0
    #allocation2 [shape = 'u8[32768]{0}', space=vmem, size = 0x8000, scoped, tag = 'output window, operand 0, single buffered']
    #allocation3 [shape = 's32[1]{0}', space=sflag, size = 0x4, scoped, tag = 'scoped memory for tpu_custom_call.1']
    %8 = vsyncpa [#allocation3], 0
    // Predicated region
    $region2: #{tpu_custom_call.1} parent=1 // pred_check
      _
    $region3: #{tpu_custom_call.1} parent=1 // pred_check_branch
      %10 = sbr.rel (0) target = $region5
    $region4: #{tpu_custom_call.1} parent=1 // pred_region
      _
    $region5: #{tpu_custom_call.1} parent=1 // pred_fallthru
      _
    // Predicated region
    $region6: #{tpu_custom_call.1} parent=1 // pred_check
      _
    $region7: #{tpu_custom_call.1} parent=1 // pred_check_branch
      %12 = sbr.rel (0) target = $region9
    $region8: #{tpu_custom_call.1} parent=1 // pred_region
      _
    $region9: #{tpu_custom_call.1} parent=1 // pred_fallthru
      _
    // Predicated region
    $region10: #{tpu_custom_call.1} parent=1 // pred_check
      _
    $region11: #{tpu_custom_call.1} parent=1 // pred_check_branch
      %14 = sbr.rel (0) target = $region13
    $region12: #{tpu_custom_call.1} parent=1 // pred_region
      _
    $region13: #{tpu_custom_call.1} parent=1 // pred_fallthru
      _
    %v15 = vld [vmem:[%s0] sm:$0xff]
    %v16 = vld [vmem:[%s0 + $0x8] sm:$0xff]
    %v17 = vld [vmem:[%s0 + $0x10] sm:$0xff]
    %v18 = vld [vmem:[%s0 + $0x18] sm:$0xff]
    %v19 = vld [vmem:[%s0 + $0x20] sm:$0xff]
    %v20 = vld [vmem:[%s0 + $0x28] sm:$0xff]
    %v21 = vld [vmem:[%s0 + $0x30] sm:$0xff]
    %v22 = vld [vmem:[%s0 + $0x38] sm:$0xff]
    %v23 = vsub.f32 0.0, %v15
    %v24 = vsub.f32 0.0, %v16
    %v25 = vsub.f32 0.0, %v17
    %v26 = vsub.f32 0.0, %v18
    %v27 = vsub.f32 0.0, %v19
    %v28 = vsub.f32 0.0, %v20
    %v29 = vsub.f32 0.0, %v21
    %v30 = vsub.f32 0.0, %v22
    %v31 = vmul.f32 %v23, 1.442695
    %v32 = vpow.pop %v31
    %v33 = vmul.f32 %v24, 1.442695
    %v34 = vpow.pop %v33
    %v35 = vmul.f32 %v25, 1.442695
    %v36 = vpow.pop %v35
    %v37 = vmul.f32 %v26, 1.442695
    %v38 = vpow.pop %v37
    %v39 = vmul.f32 %v27, 1.442695
    %v40 = vpow.pop %v39
    %v41 = vmul.f32 %v28, 1.442695
    %v42 = vpow.pop %v41
    %v43 = vmul.f32 %v29, 1.442695
    %v44 = vpow.pop %v43
    %v45 = vmul.f32 %v30, 1.442695
    %v46 = vpow.pop %v45
    %v47 = vld [vmem:[%s1] sm:$0x1]
    %49 = vset.pattern.permute.xlu0 0
    %50 = vperm.xlu0 %49, %v32
    %v51 = vpop.permute.xlu0 %50
    %54 = vset.pattern.permute.xlu0 0
    %55 = vperm.xlu0 %54, %v34
    %v56 = vpop.permute.xlu0 %55
    %59 = vset.pattern.permute.xlu0 0
    %60 = vperm.xlu0 %59, %v36
    %v61 = vpop.permute.xlu0 %60
    %64 = vset.pattern.permute.xlu0 0
    %65 = vperm.xlu0 %64, %v38
    %v66 = vpop.permute.xlu0 %65
    %69 = vset.pattern.permute.xlu0 0
    %70 = vperm.xlu0 %69, %v40
    %v71 = vpop.permute.xlu0 %70
    %74 = vset.pattern.permute.xlu0 0
    %75 = vperm.xlu0 %74, %v42
    %v76 = vpop.permute.xlu0 %75
    %79 = vset.pattern.permute.xlu0 0
    %80 = vperm.xlu0 %79, %v44
    %v81 = vpop.permute.xlu0 %80
    %84 = vset.pattern.permute.xlu0 0
    %85 = vperm.xlu0 %84, %v46
    %v86 = vpop.permute.xlu0 %85
    %v89 = vlaneseq
    %v90 = vshrl.u32 %v89, 7
    %v91 = vsub.s32 0, %v90
    %v92 = vrot.slane %v47, %v91
    %v94 = vsub.f32 %v51, %v92
    %v95 = vsub.f32 %v56, %v92
    %v96 = vsub.f32 %v61, %v92
    %v97 = vsub.f32 %v66, %v92
    %v98 = vsub.f32 %v71, %v92
    %v99 = vsub.f32 %v76, %v92
    %v100 = vsub.f32 %v81, %v92
    %v101 = vsub.f32 %v86, %v92
    %v102 = vld [vmem:[%s2] sm:$0x1]
    %v103 = vsub.f32 0.0, %v102
    %v105 = vlaneseq
    %v106 = vshrl.u32 %v105, 7
    %v107 = vsub.s32 0, %v106
    %v108 = vrot.slane %v103, %v107
    %v110 = vmul.f32 %v108, %v94
    %v111 = vmul.f32 %v108, %v95
    %v112 = vmul.f32 %v108, %v96
    %v113 = vmul.f32 %v108, %v97
    %v114 = vmul.f32 %v108, %v98
    %v115 = vmul.f32 %v108, %v99
    %v116 = vmul.f32 %v108, %v100
    %v117 = vmul.f32 %v108, %v101
    %v118 = vmul.f32 %v110, %v94
    %v119 = vmul.f32 %v111, %v95
    %v120 = vmul.f32 %v112, %v96
    %v121 = vmul.f32 %v113, %v97
    %v122 = vmul.f32 %v114, %v98
    %v123 = vmul.f32 %v115, %v99
    %v124 = vmul.f32 %v116, %v100
    %v125 = vmul.f32 %v117, %v101
    %v126 = vmul.f32 %v118, 1.442695
    %v127 = vpow.pop %v126
    %v128 = vmul.f32 %v119, 1.442695
    %v129 = vpow.pop %v128
    %v130 = vmul.f32 %v120, 1.442695
    %v131 = vpow.pop %v130
    %v132 = vmul.f32 %v121, 1.442695
    %v133 = vpow.pop %v132
    %v134 = vmul.f32 %v122, 1.442695
    %v135 = vpow.pop %v134
    %v136 = vmul.f32 %v123, 1.442695
    %v137 = vpow.pop %v136
    %v138 = vmul.f32 %v124, 1.442695
    %v139 = vpow.pop %v138
    %v140 = vmul.f32 %v125, 1.442695
    %v141 = vpow.pop %v140
    %142 = vst [vmem:[#allocation2] sm:$0xff] %v127
    %143 = vst [vmem:[#allocation2 + $0x8] sm:$0xff] %v129
    %144 = vst [vmem:[#allocation2 + $0x10] sm:$0xff] %v131
    %145 = vst [vmem:[#allocation2 + $0x18] sm:$0xff] %v133
    %146 = vst [vmem:[#allocation2 + $0x20] sm:$0xff] %v135
    %147 = vst [vmem:[#allocation2 + $0x28] sm:$0xff] %v137
    %148 = vst [vmem:[#allocation2 + $0x30] sm:$0xff] %v139
    %149 = vst [vmem:[#allocation2 + $0x38] sm:$0xff] %v141
    // Predicated region
    $region14: #{tpu_custom_call.1} parent=1 // pred_check
      _
    $region15: #{tpu_custom_call.1} parent=1 // pred_check_branch
      %151 = sbr.rel (0) target = $region17
    $region16: #{tpu_custom_call.1} parent=1 // pred_region
      %s153 = ssub.s32 1024, 1024
      %154 = vsyncadd [#allocation3], %s153
      %s155 = sshll.u32 [#allocation2], 4
      %s156 = int_to_ptr.vmem [resolvable:$true] %s155
      %161 = dma.vmem_to_hbm [thread:$0]  %s156, 1024, %s3, [#allocation3], 128, 128, 8
    $region17: #{tpu_custom_call.1} parent=1 // pred_fallthru
      _
    // Predicated region
    $region18: #{tpu_custom_call.1} parent=1 // pred_check
      _
    $region19: #{tpu_custom_call.1} parent=1 // pred_check_branch
      %163 = sbr.rel (0) target = $region21
    $region20: #{tpu_custom_call.1} parent=1 // pred_region
      %164 = dma.done [#allocation3], 1024
    $region21: #{tpu_custom_call.1} parent=1 // pred_fallthru
      _
    %165 = vsyncpa [#allocation3], 1

</llo_original>
